<compile_context>
chip_gen: v7x
topology: tpu7x:2x2x1
jax: 0.10.0
libtpu: 0.0.40
codegen_flags: <defaults>
</compile_context>

<pallas_src>
import math
import functools

import jax
import jax.numpy as jnp
from jax.experimental import pallas as pl
from jax.experimental.pallas import tpu as pltpu


FEAT = 70          # logical feature width of the module
NEG_SLOPE = 0.01   # F.leaky_relu default negative slope


def _round_up(x, m):
    return ((x + m - 1) // m) * m


# ----------------------------------------------------------------------------
# Fused kernel:  h = leaky_relu(x @ w0) ; o = leaky_relu(h @ w1)
#   x tile : (tn, 70)     w0, w1 : (70, 70) full blocks, resident in VMEM.
#   leaky_relu = max(y, 0.01*y)  -> one vmul + one vmax per vreg (VPU).
# ----------------------------------------------------------------------------
def _fused_two_layer_kernel(x_ref, w0_ref, w1_ref, h_ref, o_ref):
    y = jnp.dot(x_ref[...], w0_ref[...], preferred_element_type=jnp.float32)
    y = jnp.maximum(y, NEG_SLOPE * y)
    h_ref[...] = y.astype(h_ref.dtype)
    z = jnp.dot(y, w1_ref[...], preferred_element_type=jnp.float32)
    o_ref[...] = jnp.maximum(z, NEG_SLOPE * z).astype(o_ref.dtype)


@functools.partial(jax.jit, static_argnames=("tile_n",))
def fused_two_layer(x, w0, w1, *, tile_n=512):
    """Returns (h, g) = (leaky_relu(x@w0), leaky_relu(leaky_relu(x@w0)@w1))."""
    n, k = x.shape
    k0, m0 = w0.shape
    k1, m1 = w1.shape
    assert k == k0 and m0 == k1

    # Row tile: multiple of 8 (sublane), capped so small inputs stay small.
    tn = min(tile_n, _round_up(max(n, 8), 8))
    grid = (pl.cdiv(n, tn),)

    cost = pl.CostEstimate(
        flops=2 * n * k * m0 + 2 * n * m0 * m1,          # two matmuls
        transcendentals=0,
        bytes_accessed=4 * (n * k + n * m0 + n * m1 + k0 * m0 + k1 * m1),
    )

    h, o = pl.pallas_call(
        _fused_two_layer_kernel,
        out_shape=(
            jax.ShapeDtypeStruct((n, m0), jnp.float32),
            jax.ShapeDtypeStruct((n, m1), jnp.float32),
        ),
        grid=grid,
        in_specs=[
            pl.BlockSpec((tn, k), lambda i: (i, 0)),      # x row-tile
            pl.BlockSpec((k0, m0), lambda i: (0, 0)),     # w0 resident in VMEM
            pl.BlockSpec((k1, m1), lambda i: (0, 0)),     # w1 resident in VMEM
        ],
        out_specs=(
            pl.BlockSpec((tn, m0), lambda i: (i, 0)),
            pl.BlockSpec((tn, m1), lambda i: (i, 0)),
        ),
        compiler_params=pltpu.CompilerParams(
            # Row tiles are fully independent -> shard across TensorCores.
            dimension_semantics=("parallel",),
        ),
        cost_estimate=cost,
    )(x, w0, w1)

    return h, o


# ----------------------------------------------------------------------------
# generator_conv.conv1 is referenced by the PyTorch module but is NOT defined
# anywhere in the provided source, so its semantics cannot be reproduced.
# TODO(synk): replace this identity pass-through once generator_conv.conv1's
#             definition is available; if the real conv1 transforms G between
#             the two layers, the fused two-layer kernel must be split back
#             into two pallas_calls around it.
# ----------------------------------------------------------------------------
def _conv1_placeholder(X, dis, weight):
    return X, weight, X, dis, jnp.zeros_like(weight)


# ----------------------------------------------------------------------------
# generator.forward equivalent
# ----------------------------------------------------------------------------
def generator_forward(params, X, dis, weight):
    w0, w1 = params["weight"], params["weight1"]
    delta_W = []

    # First conv1 (placeholder: identity on G).
    G0, W, H, dis1, delta_W1 = _conv1_placeholder(X, dis, weight)
    delta_W.append(delta_W1)

    # Fused: leaky_relu(G0 @ weight) followed by leaky_relu(. @ weight1).
    # (The second conv1 placeholder is identity on G, so fusing the two
    #  layers is exact under the current placeholder semantics.)
    G1, G = fused_two_layer(G0, w0, w1)

    # Second conv1 (placeholder) — provides the returned W / H / delta_W1.
    _, W, H, dis1, delta_W1 = _conv1_placeholder(G1, dis1, W)
    delta_W.append(delta_W1)

    return G, W, H, delta_W


def init_params(key):
    # reset_parameters(): uniform_(-stdv, stdv) with stdv = 1/sqrt(70)
    stdv = 1.0 / math.sqrt(float(FEAT))
    k0, k1 = jax.random.split(key)
    weight = jax.random.uniform(k0, (FEAT, FEAT), jnp.float32, minval=-stdv, maxval=stdv)
    weight1 = jax.random.uniform(k1, (FEAT, FEAT), jnp.float32, minval=-stdv, maxval=stdv)
    return {"weight": weight, "weight1": weight1}


if __name__ == "__main__":
    key = jax.random.PRNGKey(0)
    kp, kx, kd, kw = jax.random.split(key, 4)

    params = init_params(kp)

    # Small deterministic example inputs consistent with the 70-dim feature
    # space implied by the (70, 70) learned weights.
    N = 8                                   # number of nodes / rows
    X = jax.random.normal(kx, (N, FEAT), jnp.float32)
    dis = jax.random.normal(kd, (N, N), jnp.float32)
    weight = jax.random.normal(kw, (FEAT, FEAT), jnp.float32)

    G, W, H, delta_W = generator_forward(params, X, dis, weight)
    jax.block_until_ready(G)
    jax.block_until_ready(W)
    jax.block_until_ready(H)
    jax.block_until_ready(delta_W)

    assert G.shape == (N, FEAT) and G.dtype == jnp.float32
    assert H.shape == (N, FEAT)

    # Sanity check against a pure-JAX reference of the fused kernel path.
    y = X @ params["weight"]
    h_ref = jnp.where(y >= 0.0, y, NEG_SLOPE * y)
    z = h_ref @ params["weight1"]
    g_ref = jnp.where(z >= 0.0, z, NEG_SLOPE * z)
    assert jnp.allclose(H, h_ref, atol=1e-4, rtol=1e-4)
    assert jnp.allclose(G, g_ref, atol=1e-4, rtol=1e-4)

    print("KERNEL_OK")
</pallas_src>

<mosaic_0001>
module attributes {stable_mosaic.version = 11 : i64} {
  func.func @_fused_two_layer_kernel(%arg0: i32, %arg1: memref<8x70xf32, #tpu.memory_space<vmem>>, %arg2: memref<70x70xf32, #tpu.memory_space<vmem>>, %arg3: memref<70x70xf32, #tpu.memory_space<vmem>>, %arg4: memref<8x70xf32, #tpu.memory_space<vmem>>, %arg5: memref<8x70xf32, #tpu.memory_space<vmem>>) attributes {dimension_semantics = [#tpu.dimension_semantics<parallel>], iteration_bounds = array<i64: 1>, scalar_prefetch = 0 : i64, scratch_operands = 0 : i64, tpu.core_type = #tpu.core_type<tc>, window_params = [{transform_indices = @transform_0, window_bounds = array<i64: 8, 70>}, {pipeline_mode = #tpu.pipeline_mode<synchronous>, transform_indices = @transform_1, window_bounds = array<i64: 70, 70>}, {pipeline_mode = #tpu.pipeline_mode<synchronous>, transform_indices = @transform_2, window_bounds = array<i64: 70, 70>}, {transform_indices = @transform_3, window_bounds = array<i64: 8, 70>}, {transform_indices = @transform_4, window_bounds = array<i64: 8, 70>}]} {
    %c0 = arith.constant 0 : index
    %c0_0 = arith.constant 0 : index
    %0 = vector.load %arg1[%c0, %c0_0] : memref<8x70xf32, #tpu.memory_space<vmem>>, vector<8x70xf32>
    %c0_1 = arith.constant 0 : index
    %c0_2 = arith.constant 0 : index
    %1 = vector.load %arg2[%c0_1, %c0_2] : memref<70x70xf32, #tpu.memory_space<vmem>>, vector<70x70xf32>
    %cst = arith.constant dense<0.000000e+00> : vector<8x70xf32>
    %2 = tpu.matmul %0, %1, %cst {dimension_numbers = #tpu.dot_dimension_numbers<[1], [0], [0], [1], [0, 0, 1, 1], [], []>} : vector<8x70xf32>, vector<70x70xf32>, vector<8x70xf32> -> vector<8x70xf32>
    %cst_3 = arith.constant 0.00999999977 : f32
    %3 = vector.broadcast %cst_3 : f32 to vector<8x70xf32>
    %4 = arith.mulf %3, %2 : vector<8x70xf32>
    %5 = arith.maximumf %2, %4 : vector<8x70xf32>
    %c0_4 = arith.constant 0 : index
    %c0_5 = arith.constant 0 : index
    %6 = vector.load %arg4[%c0_4, %c0_5] : memref<8x70xf32, #tpu.memory_space<vmem>>, vector<8x70xf32>
    tpu.vector_store %arg4[%c0_4, %c0_5], %5 {strides = array<i32>} : memref<8x70xf32, #tpu.memory_space<vmem>>, vector<8x70xf32>,
    %c0_6 = arith.constant 0 : index
    %c0_7 = arith.constant 0 : index
    %7 = vector.load %arg3[%c0_6, %c0_7] : memref<70x70xf32, #tpu.memory_space<vmem>>, vector<70x70xf32>
    %cst_8 = arith.constant dense<0.000000e+00> : vector<8x70xf32>
    %8 = tpu.matmul %5, %7, %cst_8 {dimension_numbers = #tpu.dot_dimension_numbers<[1], [0], [0], [1], [0, 0, 1, 1], [], []>} : vector<8x70xf32>, vector<70x70xf32>, vector<8x70xf32> -> vector<8x70xf32>
    %cst_9 = arith.constant 0.00999999977 : f32
    %9 = vector.broadcast %cst_9 : f32 to vector<8x70xf32>
    %10 = arith.mulf %9, %8 : vector<8x70xf32>
    %11 = arith.maximumf %8, %10 : vector<8x70xf32>
    %c0_10 = arith.constant 0 : index
    %c0_11 = arith.constant 0 : index
    %12 = vector.load %arg5[%c0_10, %c0_11] : memref<8x70xf32, #tpu.memory_space<vmem>>, vector<8x70xf32>
    tpu.vector_store %arg5[%c0_10, %c0_11], %11 {strides = array<i32>} : memref<8x70xf32, #tpu.memory_space<vmem>>, vector<8x70xf32>,
    return
  }
  func.func @transform_0(%arg0: i32) -> (i32, i32) {
    %c0_i32 = arith.constant 0 : i32
    %c0_i32_0 = arith.constant 0 : i32
    return %arg0, %c0_i32 : i32, i32
  }
  func.func @transform_1(%arg0: i32) -> (i32, i32) {
    %c0_i32 = arith.constant 0 : i32
    %c0_i32_0 = arith.constant 0 : i32
    %c0_i32_1 = arith.constant 0 : i32
    return %c0_i32, %c0_i32_0 : i32, i32
  }
  func.func @transform_2(%arg0: i32) -> (i32, i32) {
    %c0_i32 = arith.constant 0 : i32
    %c0_i32_0 = arith.constant 0 : i32
    %c0_i32_1 = arith.constant 0 : i32
    return %c0_i32, %c0_i32_0 : i32, i32
  }
  func.func @transform_3(%arg0: i32) -> (i32, i32) {
    %c0_i32 = arith.constant 0 : i32
    %c0_i32_0 = arith.constant 0 : i32
    return %arg0, %c0_i32 : i32, i32
  }
  func.func @transform_4(%arg0: i32) -> (i32, i32) {
    %c0_i32 = arith.constant 0 : i32
    %c0_i32_0 = arith.constant 0 : i32
    return %arg0, %c0_i32 : i32, i32
  }
}

</mosaic_0001>

<llo_original>
// kernel: fused_two_layer.1
$region0: #{fused_two_layer.1}
  #allocation0 [shape = 'u32[]', space=smem, size = 0x4, offset = 0x4, fixed_abs, tag = 'smem constant byte address 0x4 - core index']
  #allocation1 [shape = 'u32[144,128]{1,0:T(1,128)}', space=vmem, size = 0x12000, scoped, tag = 'internal scratch']
  %s0 = inlined_call_operand.hbm [shape: f32[8,70], index: 0, kind: input, shape index: {}]
  %s1 = inlined_call_operand.hbm [shape: f32[70,70], index: 1, kind: input, shape index: {}]
  %s2 = inlined_call_operand.hbm [shape: f32[70,70], index: 2, kind: input, shape index: {}]
  %s3 = inlined_call_operand.hbm [shape: f32[8,70], index: 3, kind: output, shape index: {0}]
  %s4 = inlined_call_operand.hbm [shape: f32[8,70], index: 4, kind: output, shape index: {1}]
  %5 = xla_tuple %s3, %s4
  %s6 = sld [smem:[#allocation0]]
  $region42: #{fused_two_layer.1} parent=0
    _
  %s8 = ssub.s32 1, %s6
  %s9 = scalar_select 0, %s8, %s6
  $region1: #{fused_two_layer.1} parent=0
    #allocation2 [shape = 'u8[4096]{0}', space=vmem, size = 0x1000, scoped, tag = 'input window, operand 0, single buffered']
    #allocation3 [shape = 's32[1]{0}', space=sflag, size = 0x4, scoped, tag = 'scoped memory for fused_two_layer.1']
    #allocation4 [shape = 's32[1]{0}', space=sflag, size = 0x4, scoped, tag = 'scoped memory for fused_two_layer.1']
    #allocation5 [shape = 'u8[36864]{0}', space=vmem, size = 0x9000, scoped, tag = 'input window, operand 1, single buffered']
    #allocation6 [shape = 's32[1]{0}', space=sflag, size = 0x4, scoped, tag = 'scoped memory for fused_two_layer.1']
    #allocation7 [shape = 'u8[36864]{0}', space=vmem, size = 0x9000, scoped, tag = 'input window, operand 2, single buffered']
    #allocation8 [shape = 'u8[4096]{0}', space=vmem, size = 0x1000, scoped, tag = 'output window, operand 0, single buffered']
    #allocation9 [shape = 'u8[4096]{0}', space=vmem, size = 0x1000, scoped, tag = 'output window, operand 1, single buffered']
    #allocation10 [shape = 's32[1]{0}', space=sflag, size = 0x4, scoped, tag = 'scoped memory for fused_two_layer.1']
    %10 = vsyncpa [#allocation3], 0
    %11 = vsyncpa [#allocation6], 0
    %12 = vsyncpa [#allocation4], 0
    %13 = vsyncpa [#allocation10], 0
    // Predicated region
    $region2: #{fused_two_layer.1} parent=1 // pred_check
      _
    $region3: #{fused_two_layer.1} parent=1 // pred_check_branch
      %15 = sbr.rel (0) target = $region5
    $region4: #{fused_two_layer.1} parent=1 // pred_region
      %s17 = ssub.s32 128, 128
      %18 = vsyncadd [#allocation3], %s17
      %s20 = sshll.u32 [#allocation2], 4
      %s21 = int_to_ptr.vmem [resolvable:$true] %s20
      %23 = dma.hbm_to_vmem [thread:$0]  %s0, 128, %s21, [#allocation3]
    $region5: #{fused_two_layer.1} parent=1 // pred_fallthru
      _
    // Predicated region
    $region6: #{fused_two_layer.1} parent=1 // pred_check
      _
    $region7: #{fused_two_layer.1} parent=1 // pred_check_branch
      %25 = sbr.rel (0) target = $region9
    $region8: #{fused_two_layer.1} parent=1 // pred_region
      %s27 = ssub.s32 1152, 1152
      %28 = vsyncadd [#allocation6], %s27
      %s29 = sshll.u32 [#allocation5], 4
      %s30 = int_to_ptr.vmem [resolvable:$true] %s29
      %35 = dma.hbm_to_vmem [thread:$0]  %s1, 1152, %s30, [#allocation6], 128, 128, 8
    $region9: #{fused_two_layer.1} parent=1 // pred_fallthru
      _
    // Predicated region
    $region10: #{fused_two_layer.1} parent=1 // pred_check
      _
    $region11: #{fused_two_layer.1} parent=1 // pred_check_branch
      %37 = sbr.rel (0) target = $region13
    $region12: #{fused_two_layer.1} parent=1 // pred_region
      %s39 = ssub.s32 1152, 1152
      %40 = vsyncadd [#allocation6], %s39
      %s41 = sshll.u32 [#allocation7], 4
      %s42 = int_to_ptr.vmem [resolvable:$true] %s41
      %47 = dma.hbm_to_vmem [thread:$0]  %s2, 1152, %s42, [#allocation6], 128, 128, 8
    $region13: #{fused_two_layer.1} parent=1 // pred_fallthru
      _
    // Predicated region
    $region14: #{fused_two_layer.1} parent=1 // pred_check
      _
    $region15: #{fused_two_layer.1} parent=1 // pred_check_branch
      %49 = sbr.rel (0) target = $region17
    $region16: #{fused_two_layer.1} parent=1 // pred_region
      %50 = dma.done [#allocation3], 128
    $region17: #{fused_two_layer.1} parent=1 // pred_fallthru
      _
    // Predicated region
    $region18: #{fused_two_layer.1} parent=1 // pred_check
      _
    $region19: #{fused_two_layer.1} parent=1 // pred_check_branch
      %52 = sbr.rel (0) target = $region21
    $region20: #{fused_two_layer.1} parent=1 // pred_region
      %53 = dma.done [#allocation6], 1152
    $region21: #{fused_two_layer.1} parent=1 // pred_fallthru
      _
    // Predicated region
    $region22: #{fused_two_layer.1} parent=1 // pred_check
      _
    $region23: #{fused_two_layer.1} parent=1 // pred_check_branch
      %55 = sbr.rel (0) target = $region25
    $region24: #{fused_two_layer.1} parent=1 // pred_region
      %56 = dma.done [#allocation6], 1152
    $region25: #{fused_two_layer.1} parent=1 // pred_fallthru
      _
    %v57 = vld [vmem:[#allocation2] sm:$0xff]
    %v58 = vld [vmem:[#allocation5] sm:$0xff]
    %v59 = vld [vmem:[#allocation5 + $0x8] sm:$0xff]
    %v60 = vld [vmem:[#allocation5 + $0x10] sm:$0xff]
    %v61 = vld [vmem:[#allocation5 + $0x18] sm:$0xff]
    %v62 = vld [vmem:[#allocation5 + $0x20] sm:$0xff]
    %v63 = vld [vmem:[#allocation5 + $0x28] sm:$0xff]
    %v64 = vld [vmem:[#allocation5 + $0x30] sm:$0xff]
    %v65 = vld [vmem:[#allocation5 + $0x38] sm:$0xff]
    %v66 = vld [vmem:[#allocation5 + $0x40] sm:$0x3f]
    %vm67 = vcmask 572416
    %v69 = vsel %vm67, %v57, 0
    %vm71 = vcmask 1045504
    %v73 = vsel %vm71, %v66, 0
    %75 = vmatprep.subr.mxu0 0.0
    %76 = vmatpush1.msra.mxu0 %v58
    %77 = vmatprep.subr.mxu0 0.0
    %78 = vmatpush1.msra.mxu0 %v59
    %79 = vmatprep.subr.mxu0 0.0
    %80 = vmatpush1.msra.mxu0 %v60
    %81 = vmatprep.subr.mxu0 0.0
    %82 = vmatpush1.msra.mxu0 %v61
    %83 = vmatprep.subr.mxu0 0.0
    %84 = vmatpush1.msra.mxu0 %v62
    %85 = vmatprep.subr.mxu0 0.0
    %86 = vmatpush1.msra.mxu0 %v63
    %87 = vmatprep.subr.mxu0 0.0
    %88 = vmatpush1.msra.mxu0 %v64
    %89 = vmatprep.subr.mxu0 0.0
    %90 = vmatpush1.msra.mxu0 %v65
    %91 = vmatprep.subr.mxu0 0.0
    %92 = vmatpush1.msra.mxu0 %v73
    %93 = vmatprep.subr.mxu0 0.0
    %94 = vmatpush1.msra.mxu0 0.0
    %95 = vmatprep.subr.mxu0 0.0
    %96 = vmatpush1.msra.mxu0 0.0
    %97 = vmatprep.subr.mxu0 0.0
    %98 = vmatpush1.msra.mxu0 0.0
    %99 = vmatprep.subr.mxu0 0.0
    %100 = vmatpush1.msra.mxu0 0.0
    %101 = vmatprep.subr.mxu0 0.0
    %102 = vmatpush1.msra.mxu0 0.0
    %103 = vmatprep.subr.mxu0 0.0
    %104 = vmatpush1.msra.mxu0 0.0
    %105 = vmatprep.subr.mxu0 0.0
    %106 = vmatpush1.msra.mxu0 0.0
    %107 = vmatprep.subr.mxu0 0.0
    %108 = vmatpush1.msra.mxu0 0.0
    %109 = vmatprep.subr.mxu0 0.0
    %110 = vmatpush1.msra.mxu0 0.0
    %111 = vmatprep.subr.mxu0 0.0
    %112 = vmatpush1.msra.mxu0 0.0
    %113 = vmatprep.subr.mxu0 0.0
    %114 = vmatpush1.msra.mxu0 0.0
    %115 = vmatprep.subr.mxu0 0.0
    %116 = vmatpush1.msra.mxu0 0.0
    %117 = vmatprep.subr.mxu0 0.0
    %118 = vmatpush1.msra.mxu0 0.0
    %119 = vmatprep.subr.mxu0 0.0
    %120 = vmatpush1.msra.mxu0 0.0
    %121 = vmatprep.subr.mxu0 0.0
    %122 = vmatpush1.msra.mxu0 0.0
    %123 = vmatprep.subr.mxu0 0.0
    %124 = vmatpush1.msra.mxu0 0.0
    %125 = vmatprep.subr.mxu0 0.0
    %126 = vmatpush1.msra.mxu0 0.0
    %127 = vmatprep.subr.mxu0 0.0
    %128 = vmatpush1.msra.mxu0 0.0
    %129 = vmatprep.subr.mxu0 0.0
    %130 = vmatpush1.msra.mxu0 0.0
    %131 = vmatprep.subr.mxu0 0.0
    %132 = vmatpush1.msra.mxu0 0.0
    %133 = vmatprep.subr.mxu0 0.0
    %134 = vmatpush1.msra.mxu0 0.0
    %135 = vmatprep.subr.mxu0 0.0
    %136 = vmatpush1.msra.mxu0 0.0
    %137 = vmatprep.subr.mxu0 0.0
    %138 = vmatpush1.msra.mxu0 0.0
    %139 = vmatprep.mubr.f32.mxu0 0.0
    %140 = vmatmul.mubr.f32.gmra.mrb[0].mxu0 %v69
    %v141 = vpop.f32.mrb[0].mxu0
    %v142 = vadd.f32 0.0, %v141
    %v143 = vpop.f32.mrb[0].mxu0
    %144 = vdwg.mxu0
    %v145 = vmul.f32 %v142, 0.01
    %v146 = vmax.f32 %v142, %v145
    %147 = vst.msk [vmem:[#allocation8] sm:$0xff] %vm67, %v146
    %v148 = vld [vmem:[#allocation7] sm:$0xff]
    %v149 = vld [vmem:[#allocation7 + $0x8] sm:$0xff]
    %v150 = vld [vmem:[#allocation7 + $0x10] sm:$0xff]
    %v151 = vld [vmem:[#allocation7 + $0x18] sm:$0xff]
    %v152 = vld [vmem:[#allocation7 + $0x20] sm:$0xff]
    %v153 = vld [vmem:[#allocation7 + $0x28] sm:$0xff]
    %v154 = vld [vmem:[#allocation7 + $0x30] sm:$0xff]
    %v155 = vld [vmem:[#allocation7 + $0x38] sm:$0xff]
    %v156 = vld [vmem:[#allocation7 + $0x40] sm:$0x3f]
    %v158 = vsel %vm67, %v146, 0
    %v161 = vsel %vm71, %v156, 0
    %163 = vmatprep.subr.mxu0 0.0
    %164 = vmatpush1.msra.mxu0 %v148
    %165 = vmatprep.subr.mxu0 0.0
    %166 = vmatpush1.msra.mxu0 %v149
    %167 = vmatprep.subr.mxu0 0.0
    %168 = vmatpush1.msra.mxu0 %v150
    %169 = vmatprep.subr.mxu0 0.0
    %170 = vmatpush1.msra.mxu0 %v151
    %171 = vmatprep.subr.mxu0 0.0
    %172 = vmatpush1.msra.mxu0 %v152
    %173 = vmatprep.subr.mxu0 0.0
    %174 = vmatpush1.msra.mxu0 %v153
    %175 = vmatprep.subr.mxu0 0.0
    %176 = vmatpush1.msra.mxu0 %v154
    %177 = vmatprep.subr.mxu0 0.0
    %178 = vmatpush1.msra.mxu0 %v155
    %179 = vmatprep.subr.mxu0 0.0
    %180 = vmatpush1.msra.mxu0 %v161
    %181 = vmatprep.subr.mxu0 0.0
    %182 = vmatpush1.msra.mxu0 0.0
    %183 = vmatprep.subr.mxu0 0.0
    %184 = vmatpush1.msra.mxu0 0.0
    %185 = vmatprep.subr.mxu0 0.0
    %186 = vmatpush1.msra.mxu0 0.0
    %187 = vmatprep.subr.mxu0 0.0
    %188 = vmatpush1.msra.mxu0 0.0
    %189 = vmatprep.subr.mxu0 0.0
    %190 = vmatpush1.msra.mxu0 0.0
    %191 = vmatprep.subr.mxu0 0.0
    %192 = vmatpush1.msra.mxu0 0.0
    %193 = vmatprep.subr.mxu0 0.0
    %194 = vmatpush1.msra.mxu0 0.0
    %195 = vmatprep.subr.mxu0 0.0
    %196 = vmatpush1.msra.mxu0 0.0
    %197 = vmatprep.subr.mxu0 0.0
    %198 = vmatpush1.msra.mxu0 0.0
    %199 = vmatprep.subr.mxu0 0.0
    %200 = vmatpush1.msra.mxu0 0.0
    %201 = vmatprep.subr.mxu0 0.0
    %202 = vmatpush1.msra.mxu0 0.0
    %203 = vmatprep.subr.mxu0 0.0
    %204 = vmatpush1.msra.mxu0 0.0
    %205 = vmatprep.subr.mxu0 0.0
    %206 = vmatpush1.msra.mxu0 0.0
    %207 = vmatprep.subr.mxu0 0.0
    %208 = vmatpush1.msra.mxu0 0.0
    %209 = vmatprep.subr.mxu0 0.0
    %210 = vmatpush1.msra.mxu0 0.0
    %211 = vmatprep.subr.mxu0 0.0
    %212 = vmatpush1.msra.mxu0 0.0
    %213 = vmatprep.subr.mxu0 0.0
    %214 = vmatpush1.msra.mxu0 0.0
    %215 = vmatprep.subr.mxu0 0.0
    %216 = vmatpush1.msra.mxu0 0.0
    %217 = vmatprep.subr.mxu0 0.0
    %218 = vmatpush1.msra.mxu0 0.0
    %219 = vmatprep.subr.mxu0 0.0
    %220 = vmatpush1.msra.mxu0 0.0
    %221 = vmatprep.subr.mxu0 0.0
    %222 = vmatpush1.msra.mxu0 0.0
    %223 = vmatprep.subr.mxu0 0.0
    %224 = vmatpush1.msra.mxu0 0.0
    %225 = vmatprep.subr.mxu0 0.0
    %226 = vmatpush1.msra.mxu0 0.0
    %227 = vmatprep.mubr.f32.mxu0 0.0
    %228 = vmatmul.mubr.f32.gmra.mrb[0].mxu0 %v158
    %v229 = vpop.f32.mrb[0].mxu0
    %v230 = vadd.f32 0.0, %v229
    %v231 = vpop.f32.mrb[0].mxu0
    %232 = vdwg.mxu0
    %v233 = vmul.f32 %v230, 0.01
    %v234 = vmax.f32 %v230, %v233
    %235 = vst.msk [vmem:[#allocation9] sm:$0xff] %vm67, %v234
    // Predicated region
    $region26: #{fused_two_layer.1} parent=1 // pred_check
      _
    $region27: #{fused_two_layer.1} parent=1 // pred_check_branch
      %237 = sbr.rel (0) target = $region29
    $region28: #{fused_two_layer.1} parent=1 // pred_region
      %s239 = ssub.s32 128, 128
      %240 = vsyncadd [#allocation4], %s239
      %s242 = sshll.u32 [#allocation8], 4
      %s243 = int_to_ptr.vmem [resolvable:$true] %s242
      %245 = dma.vmem_to_hbm [thread:$0]  %s243, 128, %s3, [#allocation4]
    $region29: #{fused_two_layer.1} parent=1 // pred_fallthru
      _
    // Predicated region
    $region30: #{fused_two_layer.1} parent=1 // pred_check
      _
    $region31: #{fused_two_layer.1} parent=1 // pred_check_branch
      %247 = sbr.rel (0) target = $region33
    $region32: #{fused_two_layer.1} parent=1 // pred_region
      %s249 = ssub.s32 128, 128
      %250 = vsyncadd [#allocation10], %s249
      %s252 = sshll.u32 [#allocation9], 4
      %s253 = int_to_ptr.vmem [resolvable:$true] %s252
      %255 = dma.vmem_to_hbm [thread:$0]  %s253, 128, %s4, [#allocation10]
    $region33: #{fused_two_layer.1} parent=1 // pred_fallthru
      _
    // Predicated region
    $region34: #{fused_two_layer.1} parent=1 // pred_check
      _
    $region35: #{fused_two_layer.1} parent=1 // pred_check_branch
      %257 = sbr.rel (0) target = $region37
    $region36: #{fused_two_layer.1} parent=1 // pred_region
      %258 = dma.done [#allocation4], 128
    $region37: #{fused_two_layer.1} parent=1 // pred_fallthru
      _
    // Predicated region
    $region38: #{fused_two_layer.1} parent=1 // pred_check
      _
    $region39: #{fused_two_layer.1} parent=1 // pred_check_branch
      %260 = sbr.rel (0) target = $region41
    $region40: #{fused_two_layer.1} parent=1 // pred_region
      %261 = dma.done [#allocation10], 128
    $region41: #{fused_two_layer.1} parent=1 // pred_fallthru
      _
    %262 = vsyncpa [#allocation3], 1
    %263 = vsyncpa [#allocation6], 1
    %264 = vsyncpa [#allocation4], 1
    %265 = vsyncpa [#allocation10], 1

</llo_original>
